<compile_context>
chip_gen: v7x
topology: tpu7x:2x2x1
jax: 0.10.0
libtpu: 0.0.40
codegen_flags: <defaults>
</compile_context>

<pallas_src>
import jax
import jax.numpy as jnp
from jax.experimental import pallas as pl
from jax.experimental.pallas import tpu as pltpu

KERNEL_SIZE = 3


# ----------------------------- Pallas kernel ------------------------------ #
def _stream_kernel(x_ref, seam_ref, w1_ref, wb_ref, a_ref, b_ref):
    # x_ref:    (Ci, TT)   bf16  time tile of the compact (NOT upsampled) input
    # seam_ref: (Ci, 1)    bf16  first column of the next tile (0 for last tile)
    # w1_ref:   (Co, Ci)   bf16  center tap W1
    # wb_ref:   (Co, 2*Ci) bf16  [W0 | W2] outer taps (packed once in __init__)
    # a_ref:    (Co, TT)   f32   stream A = W1 @ x[s]
    # b_ref:    (Co, TT)   f32   stream B = W0 @ x[s] + W2 @ x[s+1]
    x = x_ref[...]
    x_next = jnp.concatenate([x[:, 1:], seam_ref[...]], axis=1)   # x[:, s+1]

    # center-tap stream: (Co, Ci) @ (Ci, TT) -> f32 accumulate on MXU
    a_ref[...] = jnp.dot(w1_ref[...], x, preferred_element_type=jnp.float32)

    # outer-tap stream, tap-fused contraction over 2*Ci: (Co, 2Ci) @ (2Ci, TT)
    x2 = jnp.concatenate([x, x_next], axis=0)
    b_ref[...] = jnp.dot(wb_ref[...], x2, preferred_element_type=jnp.float32)


def _pick_time_tile(T):
    # largest lane-aligned tile that divides T; blocks stay well under the
    # default scoped VMEM limit on all generations (incl. v7x's 64 MiB VMEM).
    for tt in (512, 256, 128):
        if T % tt == 0:
            return tt
    return T  # small / odd T: one tile per batch (block == full dims)


def aps_conv_streams(x_bf, seam_bf, w1_bf, wb_bf, tt):
    """x_bf: (B, Ci, T) bf16; seam_bf: (B, nT, Ci, 1) bf16 -> (A, B) each (B, Co, T) f32."""
    B, Ci, T = x_bf.shape
    Co = w1_bf.shape[0]
    nT = T // tt
    out_sds = jax.ShapeDtypeStruct((B, Co, T), jnp.float32)
    return pl.pallas_call(
        _stream_kernel,
        out_shape=(out_sds, out_sds),
        grid=(B, nT),
        in_specs=[
            pl.BlockSpec((None, Ci, tt), lambda b, t: (b, 0, t)),       # x tile
            pl.BlockSpec((None, None, Ci, 1), lambda b, t: (b, t, 0, 0)),  # halo col
            pl.BlockSpec((Co, Ci), lambda b, t: (0, 0)),                # W1 (resident)
            pl.BlockSpec((Co, 2 * Ci), lambda b, t: (0, 0)),            # [W0|W2] (resident)
        ],
        out_specs=(
            pl.BlockSpec((None, Co, tt), lambda b, t: (b, 0, t)),
            pl.BlockSpec((None, Co, tt), lambda b, t: (b, 0, t)),
        ),
        compiler_params=pltpu.CompilerParams(
            dimension_semantics=("parallel", "parallel")),
    )(x_bf, seam_bf, w1_bf, wb_bf)


# ------------------------------- module ----------------------------------- #
class ApsUpPallas:
    def __init__(self, channels_in, channels, kernel_size=3, stride=2,
                 apspool_criterion='l2', key=None):
        assert kernel_size == KERNEL_SIZE
        self.stride = stride
        self.apspool_criterion = apspool_criterion
        key = jax.random.PRNGKey(42) if key is None else key
        # nn.Conv1d weight shape: (channels, channels_in, kernel_size), no bias.
        bound = 1.0 / (channels_in * kernel_size) ** 0.5
        w = jax.random.uniform(key, (channels, channels_in, kernel_size),
                               dtype=jnp.float32, minval=-bound, maxval=bound)
        # bf16 MXU operands, packed ONCE here (hoisted out of __call__).
        w_bf = w.astype(jnp.bfloat16)
        self.weight = w_bf.astype(jnp.float32)                  # rounded f32 copy (ref / fix-ups)
        self.w_center = w_bf[:, :, 1]                            # (Co, Ci)   bf16
        self.w_outer = jnp.concatenate([w_bf[:, :, 0], w_bf[:, :, 2]], axis=1)  # (Co, 2Ci) bf16

    def __call__(self, inp, polyphase_indices, pad):
        if self.stride == 1:
            # TODO(synk): stride==1 path (crop + plain conv, no upsample) not implemented;
            # the module is used with stride=2 here.
            raise NotImplementedError('stride==1 path not implemented')
        if self.stride > 2:
            raise Exception('Currently only stride 2 supported')

        B, Ci, T = inp.shape
        Co = self.weight.shape[0]
        pad0, pad1 = int(pad[0]), int(pad[1])
        assert pad0 >= 0 and pad1 >= 0, 'pad holds crop amounts (module applies F.pad(-pad))'
        L = 2 * T - pad0 - pad1

        # bf16 operands for the MXU (in a real model x would already be bf16).
        x_bf = inp.astype(jnp.bfloat16)
        tt = _pick_time_tile(T)
        nT = T // tt
        if nT > 1:  # one-column halo per tile; zero for the last tile
            seam = jnp.concatenate(
                [x_bf[:, :, tt::tt], jnp.zeros((B, Ci, 1), x_bf.dtype)], axis=-1)
        else:
            seam = jnp.zeros((B, Ci, 1), x_bf.dtype)
        seam = jnp.transpose(seam, (0, 2, 1))[..., None]          # (B, nT, Ci, 1)

        a, bstr = aps_conv_streams(x_bf, seam, self.w_center, self.w_outer, tt)

        # ---- cheap per-batch phase select + interleave + crop (plain JAX) ----
        p3 = polyphase_indices.reshape(B, 1, 1)
        pvec = polyphase_indices.reshape(B)
        x_f = x_bf.astype(jnp.float32)
        w0f = self.weight[:, :, 0]
        w2f = self.weight[:, :, 2]

        # B[-1] = W2 @ x[0] is only needed when nothing is cropped on the left.
        if pad0 == 0:
            bm1 = jnp.einsum('oc,bc->bo', w2f, x_f[:, :, 0])[:, :, None]
        else:
            bm1 = jnp.zeros((B, Co, 1), jnp.float32)
        b_prev = jnp.concatenate([bm1, bstr[:, :, :-1]], axis=-1)  # B[s-1]

        even = jnp.where(p3 == 0, a, b_prev)       # upsampled-domain even cols
        odd = jnp.where(p3 == 0, bstr, a)          # upsampled-domain odd cols
        full = jnp.stack([even, odd], axis=-1).reshape(B, Co, 2 * T)
        out = full[:, :, pad0:2 * T - pad1]        # crop

        # crop-before-conv boundary corrections (only first / last output column)
        if pad0 >= 1:
            jL = (pad0 - 1) // 2
            m = (pvec == ((pad0 - 1) % 2)).astype(jnp.float32)
            corr = jnp.einsum('oc,bc->bo', w0f, x_f[:, :, jL]) * m[:, None]
            out = out.at[:, :, 0].add(-corr)
        if pad1 >= 1:
            jR = (2 * T - pad1) // 2
            m = (pvec == ((2 * T - pad1) % 2)).astype(jnp.float32)
            corr = jnp.einsum('oc,bc->bo', w2f, x_f[:, :, jR]) * m[:, None]
            out = out.at[:, :, L - 1].add(-corr)
        return out


# ------------------------------ reference ---------------------------------- #
def reference_forward(x, weight, polyphase_indices, pad):
    """Direct JAX port of the PyTorch ApsUp.forward (zero-stuffed upsample, crop, conv)."""
    B, C, T = x.shape
    phase = jnp.arange(2)[None, :] == polyphase_indices[:, None]        # (B, 2)
    y = jnp.where(phase[:, :, None, None], x[:, None, :, :], 0.0)       # (B, 2, C, T)
    up = jnp.stack([y[:, 0], y[:, 1]], axis=-1).reshape(B, C, 2 * T)
    p0, p1 = int(pad[0]), int(pad[1])
    cropped = up[:, :, p0:2 * T - p1]
    return jax.lax.conv_general_dilated(
        cropped, weight, window_strides=(1,), padding=((1, 1),),
        dimension_numbers=('NCH', 'OIH', 'NCH'),
        precision=jax.lax.Precision.HIGHEST)


# --------------------------------- main ------------------------------------ #
if __name__ == "__main__":
    root = jax.random.PRNGKey(0)

    def run_case(Bn, Ci, Co, T, pad, phases, key):
        kx, kw = jax.random.split(key)
        x = jax.random.normal(kx, (Bn, Ci, T), dtype=jnp.float32)
        poly = jnp.array(phases, dtype=jnp.int32)
        model = ApsUpPallas(Ci, Co, kernel_size=3, stride=2, key=kw)
        fwd = jax.jit(lambda a, p: model(a, p, pad))
        out = jax.block_until_ready(fwd(x, poly))
        L = 2 * T - pad[0] - pad[1]
        assert out.shape == (Bn, Co, L), out.shape
        ref = reference_forward(x.astype(jnp.bfloat16).astype(jnp.float32),
                                model.weight, poly, pad)
        err = float(jnp.max(jnp.abs(out - ref)))
        assert jnp.allclose(out, ref, atol=2e-3, rtol=2e-3), err
        return err

    # small demo shape (single time tile per batch)
    run_case(2, 4, 6, 16, (1, 1), [0, 1], jax.random.fold_in(root, 0))
    # multi-tile time axis (tt=128, 3 tiles) + pad0==0 and right-crop paths
    run_case(2, 8, 8, 384, (0, 1), [1, 0], jax.random.fold_in(root, 1))

    print("KERNEL_OK")
</pallas_src>

<mosaic_0001>
module attributes {stable_mosaic.version = 11 : i64} {
  func.func @_stream_kernel(%arg0: i32, %arg1: i32, %arg2: memref<1x4x16xbf16, #tpu.memory_space<vmem>>, %arg3: memref<1x1x4x1xbf16, #tpu.memory_space<vmem>>, %arg4: memref<6x4xbf16, #tpu.memory_space<vmem>>, %arg5: memref<6x8xbf16, #tpu.memory_space<vmem>>, %arg6: memref<1x6x16xf32, #tpu.memory_space<vmem>>, %arg7: memref<1x6x16xf32, #tpu.memory_space<vmem>>) attributes {dimension_semantics = [#tpu.dimension_semantics<parallel>, #tpu.dimension_semantics<parallel>], iteration_bounds = array<i64: 2, 1>, scalar_prefetch = 0 : i64, scratch_operands = 0 : i64, tpu.core_type = #tpu.core_type<tc>, window_params = [{transform_indices = @transform_0, window_bounds = array<i64: 1, 4, 16>}, {transform_indices = @transform_1, window_bounds = array<i64: 1, 1, 4, 1>}, {pipeline_mode = #tpu.pipeline_mode<synchronous>, transform_indices = @transform_2, window_bounds = array<i64: 6, 4>}, {pipeline_mode = #tpu.pipeline_mode<synchronous>, transform_indices = @transform_3, window_bounds = array<i64: 6, 8>}, {transform_indices = @transform_4, window_bounds = array<i64: 1, 6, 16>}, {transform_indices = @transform_5, window_bounds = array<i64: 1, 6, 16>}]} {
    %c0 = arith.constant 0 : index
    %c0_0 = arith.constant 0 : index
    %c0_1 = arith.constant 0 : index
    %0 = vector.load %arg2[%c0, %c0_0, %c0_1] : memref<1x4x16xbf16, #tpu.memory_space<vmem>>, vector<1x4x16xbf16>
    %1 = vector.shape_cast %0 : vector<1x4x16xbf16> to vector<4x16xbf16>
    %2 = vector.extract_strided_slice %1 {offsets = [0, 1], sizes = [4, 15], strides = [1, 1]} : vector<4x16xbf16> to vector<4x15xbf16>
    %c0_2 = arith.constant 0 : index
    %c0_3 = arith.constant 0 : index
    %c0_4 = arith.constant 0 : index
    %c0_5 = arith.constant 0 : index
    %3 = vector.load %arg3[%c0_2, %c0_3, %c0_4, %c0_5] : memref<1x1x4x1xbf16, #tpu.memory_space<vmem>>, vector<1x1x4x1xbf16>
    %4 = vector.shape_cast %3 : vector<1x1x4x1xbf16> to vector<4x1xbf16>
    %5 = tpu.concatenate %2, %4 in 1 : vector<4x15xbf16>, vector<4x1xbf16> -> vector<4x16xbf16>
    %c0_6 = arith.constant 0 : index
    %c0_7 = arith.constant 0 : index
    %6 = vector.load %arg4[%c0_6, %c0_7] : memref<6x4xbf16, #tpu.memory_space<vmem>>, vector<6x4xbf16>
    %cst = arith.constant dense<0.000000e+00> : vector<6x16xf32>
    %7 = tpu.matmul %6, %1, %cst {dimension_numbers = #tpu.dot_dimension_numbers<[1], [0], [0], [1], [0, 0, 1, 1], [], []>} : vector<6x4xbf16>, vector<4x16xbf16>, vector<6x16xf32> -> vector<6x16xf32>
    %c0_8 = arith.constant 0 : index
    %c0_9 = arith.constant 0 : index
    %c0_10 = arith.constant 0 : index
    %8 = vector.load %arg6[%c0_8, %c0_9, %c0_10] : memref<1x6x16xf32, #tpu.memory_space<vmem>>, vector<1x6x16xf32>
    %9 = vector.shape_cast %8 : vector<1x6x16xf32> to vector<6x16xf32>
    %10 = vector.shape_cast %7 : vector<6x16xf32> to vector<1x6x16xf32>
    tpu.vector_store %arg6[%c0_8, %c0_9, %c0_10], %10 {strides = array<i32>} : memref<1x6x16xf32, #tpu.memory_space<vmem>>, vector<1x6x16xf32>,
    %11 = tpu.concatenate %1, %5 in 0 : vector<4x16xbf16>, vector<4x16xbf16> -> vector<8x16xbf16>
    %c0_11 = arith.constant 0 : index
    %c0_12 = arith.constant 0 : index
    %12 = vector.load %arg5[%c0_11, %c0_12] : memref<6x8xbf16, #tpu.memory_space<vmem>>, vector<6x8xbf16>
    %cst_13 = arith.constant dense<0.000000e+00> : vector<6x16xf32>
    %13 = tpu.matmul %12, %11, %cst_13 {dimension_numbers = #tpu.dot_dimension_numbers<[1], [0], [0], [1], [0, 0, 1, 1], [], []>} : vector<6x8xbf16>, vector<8x16xbf16>, vector<6x16xf32> -> vector<6x16xf32>
    %c0_14 = arith.constant 0 : index
    %c0_15 = arith.constant 0 : index
    %c0_16 = arith.constant 0 : index
    %14 = vector.load %arg7[%c0_14, %c0_15, %c0_16] : memref<1x6x16xf32, #tpu.memory_space<vmem>>, vector<1x6x16xf32>
    %15 = vector.shape_cast %14 : vector<1x6x16xf32> to vector<6x16xf32>
    %16 = vector.shape_cast %13 : vector<6x16xf32> to vector<1x6x16xf32>
    tpu.vector_store %arg7[%c0_14, %c0_15, %c0_16], %16 {strides = array<i32>} : memref<1x6x16xf32, #tpu.memory_space<vmem>>, vector<1x6x16xf32>,
    return
  }
  func.func @transform_0(%arg0: i32, %arg1: i32) -> (i32, i32, i32) {
    %c0_i32 = arith.constant 0 : i32
    %c0_i32_0 = arith.constant 0 : i32
    return %arg0, %c0_i32, %arg1 : i32, i32, i32
  }
  func.func @transform_1(%arg0: i32, %arg1: i32) -> (i32, i32, i32, i32) {
    %c0_i32 = arith.constant 0 : i32
    %c0_i32_0 = arith.constant 0 : i32
    %c0_i32_1 = arith.constant 0 : i32
    return %arg0, %arg1, %c0_i32, %c0_i32_0 : i32, i32, i32, i32
  }
  func.func @transform_2(%arg0: i32, %arg1: i32) -> (i32, i32) {
    %c0_i32 = arith.constant 0 : i32
    %c0_i32_0 = arith.constant 0 : i32
    %c0_i32_1 = arith.constant 0 : i32
    return %c0_i32, %c0_i32_0 : i32, i32
  }
  func.func @transform_3(%arg0: i32, %arg1: i32) -> (i32, i32) {
    %c0_i32 = arith.constant 0 : i32
    %c0_i32_0 = arith.constant 0 : i32
    %c0_i32_1 = arith.constant 0 : i32
    return %c0_i32, %c0_i32_0 : i32, i32
  }
  func.func @transform_4(%arg0: i32, %arg1: i32) -> (i32, i32, i32) {
    %c0_i32 = arith.constant 0 : i32
    %c0_i32_0 = arith.constant 0 : i32
    return %arg0, %c0_i32, %arg1 : i32, i32, i32
  }
  func.func @transform_5(%arg0: i32, %arg1: i32) -> (i32, i32, i32) {
    %c0_i32 = arith.constant 0 : i32
    %c0_i32_0 = arith.constant 0 : i32
    return %arg0, %c0_i32, %arg1 : i32, i32, i32
  }
}

</mosaic_0001>

<llo_original>
// kernel: _lambda_.1
$region0: #{_lambda_.1}
  #allocation0 [shape = 'u32[]', space=smem, size = 0x4, offset = 0x4, fixed_abs, tag = 'smem constant byte address 0x4 - core index']
  #allocation1 [shape = 'u32[144,128]{1,0:T(1,128)}', space=vmem, size = 0x12000, scoped, tag = 'internal scratch']
  %s0 = inlined_call_operand.vmem [shape: bf16[2,4,16], index: 0, kind: input, shape index: {}]
  %s1 = inlined_call_operand.vmem [shape: bf16[2,1,4,1], index: 1, kind: input, shape index: {}]
  %s2 = inlined_call_operand.vmem [shape: bf16[6,4], index: 2, kind: input, shape index: {}]
  %s3 = inlined_call_operand.vmem [shape: bf16[6,8], index: 3, kind: input, shape index: {}]
  %s4 = inlined_call_operand.vmem [shape: f32[2,6,16], index: 4, kind: output, shape index: {0}]
  %s5 = inlined_call_operand.vmem [shape: f32[2,6,16], index: 5, kind: output, shape index: {1}]
  %6 = xla_tuple %s4, %s5
  %s7 = sld [smem:[#allocation0]]
  $region57: #{_lambda_.1} parent=0
    _
  %s9 = ssub.s32 1, %s7
  %s10 = scalar_select 0, %s9, %s7
  loop: start=0, step=1, limit=4
  $region2: #{_lambda_.1} parent=0 // loop_pre_header
    _
  $region3: #{_lambda_.1} parent=0 // loop_header
    %s12 = sphi 0, %s16
    %p13 = scmp.ge.s32.totalorder %s12, 4
    %s19 = sphi 0, %s31
    %s20 = sphi 0, %s27
    %s21 = sphi 0, %s19
    %s22 = sphi 0, %s20
    %s23 = sphi 0, %s21
    %s24 = sphi 0, %s22
    %s36 = sphi 0, %s38
    %s39 = sphi 0, %s36
    %s40 = sphi 0, %s39
    %s56 = sphi 0, %s40
    %s64 = sphi 0, %s66
    %s67 = sphi 0, %s64
    %s68 = sphi 0, %s67
    %s84 = sphi 0, %s68
    %s88 = sphi 0, %s88
    %s90 = sphi 0, %s88
    %s91 = sphi 0, %s90
    %s105 = sphi 0, %s91
    %s109 = sphi 0, %s109
    %s111 = sphi 0, %s109
    %s112 = sphi 0, %s111
    %s126 = sphi 0, %s112
    %s134 = sphi 0, %s136
    %s137 = sphi 0, %s134
    %s138 = sphi 0, %s137
    %s154 = sphi 0, %s138
    %s162 = sphi 0, %s164
    %s165 = sphi 0, %s162
    %s166 = sphi 0, %s165
    %s182 = sphi 0, %s166
  $region4: #{_lambda_.1} parent=0 // loop_header_branch
    %15 = sbr.rel (%p13) target = $region8
  $region5: #{_lambda_.1} parent=0 // loop_body
    %s17 = ssub.s32 %s12, 1
    %s18 = ssub.s32 %s12, 2
    %s25 = sadd.s32 1, %s20
    %p26 = scmp.ge.s32.totalorder %s25, 1
    %s27 = scalar_select %p26, 0, %s25
    %s28 = sadd.s32 1, %s19
    %s29 = scalar_select %p26, %s28, %s19
    %p30 = scmp.ge.s32.totalorder %s29, 2
    %s31 = scalar_select %p30, 0, %s29
    %s32 = ssub.s32 %s19, %s31
    %s33 = ssub.s32 %s20, %s27
    %s34 = sor.u32 %s32, %s33
    %p35 = scmp.eq.s32.totalorder %s34, 0
    %s37 = sadd.s32 %s36, 1
    %s38 = scalar_select %p35, %s36, %s37
    %p41 = pneg %p35
    %p42 = scmp.eq.s32.totalorder %s12, 1
    %p43 = por %p41, %p42
    %p44 = scmp.ne.s32.totalorder %s36, %s39
    %p45 = scmp.eq.s32.totalorder %s12, 0
    %p46 = por %p44, %p45
    %p47 = scmp.ne.s32.totalorder %s36, %s39
    %p48 = scmp.eq.s32.totalorder %s17, 1
    %p49 = por %p47, %p48
    %p50 = scmp.ne.s32.totalorder %s39, %s40
    %p51 = scmp.eq.s32.totalorder %s17, 0
    %p52 = por %p50, %p51
    %p53 = scmp.ne.s32.totalorder %s39, %s40
    %p54 = scmp.eq.s32.totalorder %s18, 1
    %p55 = por %p53, %p54
    %p57 = scmp.ne.s32.totalorder %s40, %s56
    %p58 = scmp.eq.s32.totalorder %s18, 0
    %p59 = por %p57, %p58
    %s60 = ssub.s32 %s19, %s31
    %s61 = ssub.s32 %s20, %s27
    %s62 = sor.u32 %s60, %s61
    %p63 = scmp.eq.s32.totalorder %s62, 0
    %s65 = sadd.s32 %s64, 1
    %s66 = scalar_select %p63, %s64, %s65
    %p69 = pneg %p63
    %p70 = scmp.eq.s32.totalorder %s12, 1
    %p71 = por %p69, %p70
    %p72 = scmp.ne.s32.totalorder %s64, %s67
    %p73 = scmp.eq.s32.totalorder %s12, 0
    %p74 = por %p72, %p73
    %p75 = scmp.ne.s32.totalorder %s64, %s67
    %p76 = scmp.eq.s32.totalorder %s17, 1
    %p77 = por %p75, %p76
    %p78 = scmp.ne.s32.totalorder %s67, %s68
    %p79 = scmp.eq.s32.totalorder %s17, 0
    %p80 = por %p78, %p79
    %p81 = scmp.ne.s32.totalorder %s67, %s68
    %p82 = scmp.eq.s32.totalorder %s18, 1
    %p83 = por %p81, %p82
    %p85 = scmp.ne.s32.totalorder %s68, %s84
    %p86 = scmp.eq.s32.totalorder %s18, 0
    %p87 = por %p85, %p86
    %s89 = sadd.s32 %s88, 1
    %p92 = scmp.eq.s32.totalorder %s12, 1
    %p93 = scmp.ne.s32.totalorder %s88, %s90
    %p94 = scmp.eq.s32.totalorder %s12, 0
    %p95 = por %p93, %p94
    %p96 = scmp.ne.s32.totalorder %s88, %s90
    %p97 = scmp.eq.s32.totalorder %s17, 1
    %p98 = por %p96, %p97
    %p99 = scmp.ne.s32.totalorder %s90, %s91
    %p100 = scmp.eq.s32.totalorder %s17, 0
    %p101 = por %p99, %p100
    %p102 = scmp.ne.s32.totalorder %s90, %s91
    %p103 = scmp.eq.s32.totalorder %s18, 1
    %p104 = por %p102, %p103
    %p106 = scmp.ne.s32.totalorder %s91, %s105
    %p107 = scmp.eq.s32.totalorder %s18, 0
    %p108 = por %p106, %p107
    %s110 = sadd.s32 %s109, 1
    %p113 = scmp.eq.s32.totalorder %s12, 1
    %p114 = scmp.ne.s32.totalorder %s109, %s111
    %p115 = scmp.eq.s32.totalorder %s12, 0
    %p116 = por %p114, %p115
    %p117 = scmp.ne.s32.totalorder %s109, %s111
    %p118 = scmp.eq.s32.totalorder %s17, 1
    %p119 = por %p117, %p118
    %p120 = scmp.ne.s32.totalorder %s111, %s112
    %p121 = scmp.eq.s32.totalorder %s17, 0
    %p122 = por %p120, %p121
    %p123 = scmp.ne.s32.totalorder %s111, %s112
    %p124 = scmp.eq.s32.totalorder %s18, 1
    %p125 = por %p123, %p124
    %p127 = scmp.ne.s32.totalorder %s112, %s126
    %p128 = scmp.eq.s32.totalorder %s18, 0
    %p129 = por %p127, %p128
    %s130 = ssub.s32 %s19, %s31
    %s131 = ssub.s32 %s20, %s27
    %s132 = sor.u32 %s130, %s131
    %p133 = scmp.eq.s32.totalorder %s132, 0
    %s135 = sadd.s32 %s134, 1
    %s136 = scalar_select %p133, %s134, %s135
    %p139 = pneg %p133
    %p140 = scmp.eq.s32.totalorder %s12, 1
    %p141 = por %p139, %p140
    %p142 = scmp.ne.s32.totalorder %s134, %s137
    %p143 = scmp.eq.s32.totalorder %s12, 0
    %p144 = por %p142, %p143
    %p145 = scmp.ne.s32.totalorder %s134, %s137
    %p146 = scmp.eq.s32.totalorder %s17, 1
    %p147 = por %p145, %p146
    %p148 = scmp.ne.s32.totalorder %s137, %s138
    %p149 = scmp.eq.s32.totalorder %s17, 0
    %p150 = por %p148, %p149
    %p151 = scmp.ne.s32.totalorder %s137, %s138
    %p152 = scmp.eq.s32.totalorder %s18, 1
    %p153 = por %p151, %p152
    %p155 = scmp.ne.s32.totalorder %s138, %s154
    %p156 = scmp.eq.s32.totalorder %s18, 0
    %p157 = por %p155, %p156
    %s158 = ssub.s32 %s19, %s31
    %s159 = ssub.s32 %s20, %s27
    %s160 = sor.u32 %s158, %s159
    %p161 = scmp.eq.s32.totalorder %s160, 0
    %s163 = sadd.s32 %s162, 1
    %s164 = scalar_select %p161, %s162, %s163
    %p167 = pneg %p161
    %p168 = scmp.eq.s32.totalorder %s12, 1
    %p169 = por %p167, %p168
    %p170 = scmp.ne.s32.totalorder %s162, %s165
    %p171 = scmp.eq.s32.totalorder %s12, 0
    %p172 = por %p170, %p171
    %p173 = scmp.ne.s32.totalorder %s162, %s165
    %p174 = scmp.eq.s32.totalorder %s17, 1
    %p175 = por %p173, %p174
    %p176 = scmp.ne.s32.totalorder %s165, %s166
    %p177 = scmp.eq.s32.totalorder %s17, 0
    %p178 = por %p176, %p177
    %p179 = scmp.ne.s32.totalorder %s165, %s166
    %p180 = scmp.eq.s32.totalorder %s18, 1
    %p181 = por %p179, %p180
    %p183 = scmp.ne.s32.totalorder %s166, %s182
    %p184 = scmp.eq.s32.totalorder %s18, 0
    %p185 = por %p183, %p184
    %p186 = scmp.le.s32.totalorder 1, %s12
    %p187 = scmp.lt.s32.totalorder %s12, 3
    %p188 = pnand %p186, %p187
    %p189 = pneg %p188
    // Predicated region
    $region9: #{_lambda_.1} parent=5 // pred_check
      _
    $region10: #{_lambda_.1} parent=5 // pred_check_branch
      %191 = sbr.rel (%p188) target = $region12
    $region11: #{_lambda_.1} parent=5 // pred_region
      %s192 = ssub.s32 %s12, 1
      // Predicated region
      $region13: #{_lambda_.1} parent=11 // pred_check
        %p193 = pneg %p101
      $region14: #{_lambda_.1} parent=11 // pred_check_branch
        %195 = sbr.rel (%p193) target = $region16
      $region15: #{_lambda_.1} parent=11 // pred_region
        _
      $region16: #{_lambda_.1} parent=11 // pred_fallthru
        _
      // Predicated region
      $region17: #{_lambda_.1} parent=11 // pred_check
        %p196 = pneg %p122
      $region18: #{_lambda_.1} parent=11 // pred_check_branch
        %198 = sbr.rel (%p196) target = $region20
      $region19: #{_lambda_.1} parent=11 // pred_region
        _
      $region20: #{_lambda_.1} parent=11 // pred_fallthru
        _
    $region12: #{_lambda_.1} parent=5 // pred_fallthru
      _
    %p199 = scmp.lt.s32.totalorder %s12, 2
    // Predicated region
    $region21: #{_lambda_.1} parent=5 // pred_check
      %p200 = pneg %p199
    $region22: #{_lambda_.1} parent=5 // pred_check_branch
      %202 = sbr.rel (%p200) target = $region24
    $region23: #{_lambda_.1} parent=5 // pred_region
      // Predicated region
      $region25: #{_lambda_.1} parent=23 // pred_check
        %p203 = pneg %p46
      $region26: #{_lambda_.1} parent=23 // pred_check_branch
        %205 = sbr.rel (%p203) target = $region28
      $region27: #{_lambda_.1} parent=23 // pred_region
        %p206 = scmp.lt.s32.totalorder %s19, 1
        %s207 = scalar_select %p206, %s19, 1
        %p208 = scmp.lt.s32.totalorder %s20, 0
        %s209 = scalar_select %p208, %s20, 0
        %s210 = sadd.s32 %s209, %s207
        %s211 = smul.addr %s210, 2
        %s212 = scalar_lea.vmem %s0, %s211
      $region28: #{_lambda_.1} parent=23 // pred_fallthru
        _
      // Predicated region
      $region29: #{_lambda_.1} parent=23 // pred_check
        %p213 = pneg %p74
      $region30: #{_lambda_.1} parent=23 // pred_check_branch
        %215 = sbr.rel (%p213) target = $region32
      $region31: #{_lambda_.1} parent=23 // pred_region
        %p216 = scmp.lt.s32.totalorder %s19, 1
        %s217 = scalar_select %p216, %s19, 1
        %p218 = scmp.lt.s32.totalorder %s20, 0
        %s219 = scalar_select %p218, %s20, 0
        %s220 = sadd.s32 %s219, %s217
        %s221 = smul.addr %s220, 2
        %s222 = scalar_lea.vmem %s1, %s221
      $region32: #{_lambda_.1} parent=23 // pred_fallthru
        _
    $region24: #{_lambda_.1} parent=5 // pred_fallthru
      _
    %p223 = scmp.le.s32.totalorder 1, %s12
    %p224 = scmp.lt.s32.totalorder %s12, 3
    %p225 = pnand %p223, %p224
    %p226 = pneg %p225
    // Predicated region
    $region33: #{_lambda_.1} parent=5 // pred_check
      _
    $region34: #{_lambda_.1} parent=5 // pred_check_branch
      %228 = sbr.rel (%p225) target = $region36
    $region35: #{_lambda_.1} parent=5 // pred_region
      %s229 = ssub.s32 %s12, 1
      %p230 = scmp.lt.s32.totalorder %s21, 1
      %s231 = scalar_select %p230, %s21, 1
      %p232 = scmp.lt.s32.totalorder %s22, 0
      %s233 = scalar_select %p232, %s22, 0
      %s234 = sadd.s32 %s233, %s231
      %s235 = smul.addr %s234, 2
      %s236 = scalar_lea.vmem %s0, %s235
      %p237 = pneg %p52
      %p238 = pneg %p49
      %p239 = scmp.lt.s32.totalorder %s21, 1
      %s240 = scalar_select %p239, %s21, 1
      %p241 = scmp.lt.s32.totalorder %s22, 0
      %s242 = scalar_select %p241, %s22, 0
      %s243 = sadd.s32 %s242, %s240
      %s244 = smul.addr %s243, 2
      %s245 = scalar_lea.vmem %s1, %s244
      %p246 = pneg %p80
      %p247 = pneg %p77
      %p248 = pneg %p101
      %p249 = pneg %p98
      %p250 = pneg %p122
      %p251 = pneg %p119
      %p252 = pneg %p150
      %p253 = pneg %p147
      %p254 = scmp.lt.s32.totalorder %s21, 1
      %s255 = scalar_select %p254, %s21, 1
      %p256 = scmp.lt.s32.totalorder %s22, 0
      %s257 = scalar_select %p256, %s22, 0
      %s258 = sadd.s32 %s257, %s255
      %s259 = smul.addr %s258, 8
      %s260 = scalar_lea.vmem %s4, %s259
      %p261 = pneg %p178
      %p262 = pneg %p175
      %p263 = scmp.lt.s32.totalorder %s21, 1
      %s264 = scalar_select %p263, %s21, 1
      %p265 = scmp.lt.s32.totalorder %s22, 0
      %s266 = scalar_select %p265, %s22, 0
      %s267 = sadd.s32 %s266, %s264
      %s268 = smul.addr %s267, 8
      %s269 = scalar_lea.vmem %s5, %s268
      %p270 = scmp.lt.s32.totalorder %s21, 1
      %s271 = scalar_select %p270, %s21, 1
      %p272 = scmp.lt.s32.totalorder %s22, 0
      %s273 = scalar_select %p272, %s22, 0
      %s274 = sadd.s32 %s273, %s271
      %s275 = smul.addr %s274, 2
      %s276 = scalar_lea.vmem %s0, %s275
      %p277 = scmp.lt.s32.totalorder %s21, 1
      %s278 = scalar_select %p277, %s21, 1
      %p279 = scmp.lt.s32.totalorder %s22, 0
      %s280 = scalar_select %p279, %s22, 0
      %s281 = sadd.s32 %s280, %s278
      %s282 = smul.addr %s281, 2
      %s283 = scalar_lea.vmem %s1, %s282
      %p284 = scmp.lt.s32.totalorder %s21, 1
      %s285 = scalar_select %p284, %s21, 1
      %p286 = scmp.lt.s32.totalorder %s22, 0
      %s287 = scalar_select %p286, %s22, 0
      %s288 = sadd.s32 %s287, %s285
      %s289 = smul.addr %s288, 8
      %s290 = scalar_lea.vmem %s4, %s289
      %p291 = scmp.lt.s32.totalorder %s21, 1
      %s292 = scalar_select %p291, %s21, 1
      %p293 = scmp.lt.s32.totalorder %s22, 0
      %s294 = scalar_select %p293, %s22, 0
      %s295 = sadd.s32 %s294, %s292
      %s296 = smul.addr %s295, 8
      %s297 = scalar_lea.vmem %s5, %s296
      %v299 = vld [vmem:[%s276] sm:$0x3]
      %v300 = vld [vmem:[%s283] sm:$0x3]
      %v303 = vunpack.c.l.s4 1983009808
      %v304 = vunpack.c.0.s8 %v303
      %v305 = vlaneseq
      %v306 = vshrl.u32 %v305, 7
      %v307 = vsub.s32 %v304, %v306
      %v308 = vrot.slane %v299, %v307
      %309 = vrot.lane.b32.xlu0 %v308, 127
      %v310 = vpop.permute.xlu0 %309
      %v313 = vunpack.c.l.s4 1983009808
      %v314 = vunpack.c.0.s8 %v313
      %v315 = vlaneseq
      %v316 = vshrl.u32 %v315, 7
      %v317 = vsub.s32 %v314, %v316
      %v318 = vrot.slane %v300, %v317
      %319 = vrot.lane.b32.xlu0 %v318, 15
      %v320 = vpop.permute.xlu0 %319
      %vm321 = vcmask 121856
      %v324 = vsel %vm321, %v310, %v320
      %v325 = vld [vmem:[%s2] sm:$0x7]
      %vm326 = vcmask 31744
      %v328 = vsel %vm326, %v325, 0
      %vm330 = vcmask 1041408
      %v332 = vsel %vm330, %v299, 0
      %334 = vmatprep.subr.bf16.mxu0 0
      %335 = vmatpush1.bf16.msra.mxu0 %v332
      %336 = vmatprep.subr.bf16.mxu0 0
      %337 = vmatpush1.bf16.msra.mxu0 0
      %338 = vmatprep.subr.bf16.mxu0 0
      %339 = vmatpush1.bf16.msra.mxu0 0
      %340 = vmatprep.subr.bf16.mxu0 0
      %341 = vmatpush1.bf16.msra.mxu0 0
      %342 = vmatprep.subr.bf16.mxu0 0
      %343 = vmatpush1.bf16.msra.mxu0 0
      %344 = vmatprep.subr.bf16.mxu0 0
      %345 = vmatpush1.bf16.msra.mxu0 0
      %346 = vmatprep.subr.bf16.mxu0 0
      %347 = vmatpush1.bf16.msra.mxu0 0
      %348 = vmatprep.subr.bf16.mxu0 0
      %349 = vmatpush1.bf16.msra.mxu0 0
      %350 = vmatprep.subr.bf16.mxu0 0
      %351 = vmatpush1.bf16.msra.mxu0 0
      %352 = vmatprep.subr.bf16.mxu0 0
      %353 = vmatpush1.bf16.msra.mxu0 0
      %354 = vmatprep.subr.bf16.mxu0 0
      %355 = vmatpush1.bf16.msra.mxu0 0
      %356 = vmatprep.subr.bf16.mxu0 0
      %357 = vmatpush1.bf16.msra.mxu0 0
      %358 = vmatprep.subr.bf16.mxu0 0
      %359 = vmatpush1.bf16.msra.mxu0 0
      %360 = vmatprep.subr.bf16.mxu0 0
      %361 = vmatpush1.bf16.msra.mxu0 0
      %362 = vmatprep.subr.bf16.mxu0 0
      %363 = vmatpush1.bf16.msra.mxu0 0
      %364 = vmatprep.subr.bf16.mxu0 0
      %365 = vmatpush1.bf16.msra.mxu0 0
      %366 = vmatprep.mubr.bf16.mxu0 0
      %367 = vmatmul.mubr.bf16.gmra.mrb[0].mxu0 %v328
      %v368 = vpop.f32.mrb[0].mxu0
      %v369 = vadd.f32 0.0, %v368
      %v370 = vpop.f32.mrb[0].mxu0
      %v371 = vpop.f32.mrb[0].mxu0
      %v372 = vpop.f32.mrb[0].mxu0
      %373 = vdwg.mxu0
      %vm374 = vcmask 128000
      %375 = vst.msk [vmem:[%s290] sm:$0x3f] %vm374, %v369
      %v377 = vrot.slane %v324, 6
      %v379 = vsel %vm330, %v299, %v377
      %v380 = vld [vmem:[%s3] sm:$0x7]
      %vm381 = vcmask 64512
      %v383 = vsel %vm381, %v380, 0
      %vm385 = vcmask 1043456
      %v386 = vsel %vm385, %v379, 0
      %388 = vmatprep.subr.bf16.mxu0 0
      %389 = vmatpush1.bf16.msra.mxu0 %v386
      %390 = vmatprep.subr.bf16.mxu0 0
      %391 = vmatpush1.bf16.msra.mxu0 0
      %392 = vmatprep.subr.bf16.mxu0 0
      %393 = vmatpush1.bf16.msra.mxu0 0
      %394 = vmatprep.subr.bf16.mxu0 0
      %395 = vmatpush1.bf16.msra.mxu0 0
      %396 = vmatprep.subr.bf16.mxu0 0
      %397 = vmatpush1.bf16.msra.mxu0 0
      %398 = vmatprep.subr.bf16.mxu0 0
      %399 = vmatpush1.bf16.msra.mxu0 0
      %400 = vmatprep.subr.bf16.mxu0 0
      %401 = vmatpush1.bf16.msra.mxu0 0
      %402 = vmatprep.subr.bf16.mxu0 0
      %403 = vmatpush1.bf16.msra.mxu0 0
      %404 = vmatprep.subr.bf16.mxu0 0
      %405 = vmatpush1.bf16.msra.mxu0 0
      %406 = vmatprep.subr.bf16.mxu0 0
      %407 = vmatpush1.bf16.msra.mxu0 0
      %408 = vmatprep.subr.bf16.mxu0 0
      %409 = vmatpush1.bf16.msra.mxu0 0
      %410 = vmatprep.subr.bf16.mxu0 0
      %411 = vmatpush1.bf16.msra.mxu0 0
      %412 = vmatprep.subr.bf16.mxu0 0
      %413 = vmatpush1.bf16.msra.mxu0 0
      %414 = vmatprep.subr.bf16.mxu0 0
      %415 = vmatpush1.bf16.msra.mxu0 0
      %416 = vmatprep.subr.bf16.mxu0 0
      %417 = vmatpush1.bf16.msra.mxu0 0
      %418 = vmatprep.subr.bf16.mxu0 0
      %419 = vmatpush1.bf16.msra.mxu0 0
      %420 = vmatprep.mubr.bf16.mxu0 0
      %421 = vmatmul.mubr.bf16.gmra.mrb[0].mxu0 %v383
      %v422 = vpop.f32.mrb[0].mxu0
      %v423 = vadd.f32 0.0, %v422
      %v424 = vpop.f32.mrb[0].mxu0
      %v425 = vpop.f32.mrb[0].mxu0
      %v426 = vpop.f32.mrb[0].mxu0
      %427 = vdwg.mxu0
      %428 = vst.msk [vmem:[%s297] sm:$0x3f] %vm374, %v423
      %p429 = scmp.lt.s32.totalorder %s21, 1
      %s430 = scalar_select %p429, %s21, 1
      %p431 = scmp.lt.s32.totalorder %s22, 0
      %s432 = scalar_select %p431, %s22, 0
      %s433 = sadd.s32 %s432, %s430
      %s434 = smul.addr %s433, 8
      %s435 = scalar_lea.vmem %s4, %s434
      %p436 = scmp.lt.s32.totalorder %s21, 1
      %s437 = scalar_select %p436, %s21, 1
      %p438 = scmp.lt.s32.totalorder %s22, 0
      %s439 = scalar_select %p438, %s22, 0
      %s440 = sadd.s32 %s439, %s437
      %s441 = smul.addr %s440, 8
      %s442 = scalar_lea.vmem %s5, %s441
      // Predicated region
      $region37: #{_lambda_.1} parent=35 // pred_check
        %p443 = pneg %p147
      $region38: #{_lambda_.1} parent=35 // pred_check_branch
        %445 = sbr.rel (%p443) target = $region40
      $region39: #{_lambda_.1} parent=35 // pred_region
        _
      $region40: #{_lambda_.1} parent=35 // pred_fallthru
        _
      // Predicated region
      $region41: #{_lambda_.1} parent=35 // pred_check
        %p446 = pneg %p175
      $region42: #{_lambda_.1} parent=35 // pred_check_branch
        %448 = sbr.rel (%p446) target = $region44
      $region43: #{_lambda_.1} parent=35 // pred_region
        _
      $region44: #{_lambda_.1} parent=35 // pred_fallthru
        _
    $region36: #{_lambda_.1} parent=5 // pred_fallthru
      _
    %p449 = scmp.le.s32.totalorder 2, %s12
    // Predicated region
    $region45: #{_lambda_.1} parent=5 // pred_check
      %p450 = pneg %p449
    $region46: #{_lambda_.1} parent=5 // pred_check_branch
      %452 = sbr.rel (%p450) target = $region48
    $region47: #{_lambda_.1} parent=5 // pred_region
      %s453 = ssub.s32 %s12, 2
      // Predicated region
      $region49: #{_lambda_.1} parent=47 // pred_check
        %p454 = pneg %p153
      $region50: #{_lambda_.1} parent=47 // pred_check_branch
        %456 = sbr.rel (%p454) target = $region52
      $region51: #{_lambda_.1} parent=47 // pred_region
        %p457 = scmp.lt.s32.totalorder %s23, 1
        %s458 = scalar_select %p457, %s23, 1
        %p459 = scmp.lt.s32.totalorder %s24, 0
        %s460 = scalar_select %p459, %s24, 0
        %s461 = sadd.s32 %s460, %s458
        %s462 = smul.addr %s461, 8
        %s463 = scalar_lea.vmem %s4, %s462
      $region52: #{_lambda_.1} parent=47 // pred_fallthru
        _
      // Predicated region
      $region53: #{_lambda_.1} parent=47 // pred_check
        %p464 = pneg %p181
      $region54: #{_lambda_.1} parent=47 // pred_check_branch
        %466 = sbr.rel (%p464) target = $region56
      $region55: #{_lambda_.1} parent=47 // pred_region
        %p467 = scmp.lt.s32.totalorder %s23, 1
        %s468 = scalar_select %p467, %s23, 1
        %p469 = scmp.lt.s32.totalorder %s24, 0
        %s470 = scalar_select %p469, %s24, 0
        %s471 = sadd.s32 %s470, %s468
        %s472 = smul.addr %s471, 8
        %s473 = scalar_lea.vmem %s5, %s472
      $region56: #{_lambda_.1} parent=47 // pred_fallthru
        _
    $region48: #{_lambda_.1} parent=5 // pred_fallthru
      _
  $region6: #{_lambda_.1} parent=0 // loop_footer
    %s16 = sadd.s32 1, %s12
  $region7: #{_lambda_.1} parent=0 // loop_footer_branch
    %11 = sbr.rel target = $region3
  $region8: #{_lambda_.1} parent=0 // loop_exit
    _

</llo_original>
